<compile_context>
chip_gen: v5e
topology: v5e:2x2
jax: 0.10.0
libtpu: 0.0.40
codegen_flags: <defaults>
</compile_context>

<pallas_src>
import functools

import jax
import jax.numpy as jnp
from jax import lax
from jax.experimental import pallas as pl
from jax.experimental.pallas import tpu as pltpu


def _conv_bn_relu_kernel(x_ref, w_ref, b_ref, o_ref, xcol_ref, *,
                         B, H, Ho, WC, pad, K, with_relu):
    """Single grid step: fused im2col + matmul + bias + ReLU for the whole batch.

    x_ref:    (B, H, W*Cin)        bf16 packed activations (lane dim = W*Cin)
    w_ref:    (K*W*Cin, Wo*Cout)   bf16 banded weights (BN scale pre-folded)
    b_ref:    (1, Wo*Cout)         f32 folded bias (conv bias + BN shift), tiled over Wo
    o_ref:    (B*Ho, Wo*Cout)      bf16 output (lane-dense)
    xcol_ref: (B*Ho, K*W*Cin)      f32 scratch: im2col over kh (kw taps live in w_ref's band)
    """
    # --- one-shot im2col prologue: only the H-pad slivers are zeroed ------------------
    for b in range(B):
        xb = x_ref[b].astype(xcol_ref.dtype)           # (H, W*Cin)
        for kh in range(K):
            lo = max(0, pad - kh)                      # first output row with valid input
            hi = min(Ho, H + pad - kh)                 # one past the last valid output row
            col = slice(kh * WC, (kh + 1) * WC)
            if lo > 0:
                xcol_ref[b * Ho:b * Ho + lo, col] = jnp.zeros((lo, WC), xcol_ref.dtype)
            if hi < Ho:
                xcol_ref[b * Ho + hi:b * Ho + Ho, col] = (
                    jnp.zeros((Ho - hi, WC), xcol_ref.dtype))
            xcol_ref[b * Ho + lo:b * Ho + hi, col] = xb[lo + kh - pad:hi + kh - pad, :]

    # --- single MXU matmul, f32 accumulation ------------------------------------------
    lhs = xcol_ref[...].astype(jnp.bfloat16)           # one cast, not per tap
    acc = jnp.dot(lhs, w_ref[...], preferred_element_type=jnp.float32)

    y = acc + b_ref[...]                               # keep elementwise epilogue in f32
    if with_relu:
        y = jnp.maximum(y, 0.0)
    o_ref[...] = y.astype(o_ref.dtype)                 # single bf16 pack at the store


def prepare_conv_block_params(w_oihw, conv_bias, gamma, beta,
                              running_mean, running_var, *, W, eps=1e-5, padding=1):
    """BN fold + banded-weight construction.  HOISTED: call once per weight update."""
    Cout, Cin, K, K2 = w_oihw.shape
    assert K == K2
    Wo = W + 2 * padding - K + 1   # stride = 1

    inv_std = lax.rsqrt(running_var.astype(jnp.float32) + eps)
    scale = gamma.astype(jnp.float32) * inv_std                                # (Cout,)
    bias = (beta.astype(jnp.float32)
            + (conv_bias.astype(jnp.float32) - running_mean.astype(jnp.float32)) * scale)

    # Fold BN scale into the conv weights (standard inference BN-fold).
    w_scaled = w_oihw.astype(jnp.float32) * scale[:, None, None, None]         # (Cout,Cin,K,K)
    taps = jnp.transpose(w_scaled, (2, 3, 1, 0))                               # (K,K,Cin,Cout) [kh,kw,ci,co]

    # Banded RHS: Wb[kh*W*Cin + wi*Cin + ci, wo*Cout + co]
    #   = w_scaled[co, ci, kh, wi - wo + pad]  if 0 <= wi - wo + pad < K else 0
    # This fuses the kw taps AND the W zero-padding into one matmul contraction.
    wo_idx = jnp.arange(Wo)
    wi_idx = jnp.arange(W)
    kw = wi_idx[None, :] - wo_idx[:, None] + padding                           # (Wo, W)
    valid = (kw >= 0) & (kw < K)
    kw_c = jnp.clip(kw, 0, K - 1)
    wb = taps[:, kw_c]                                                         # (K, Wo, W, Cin, Cout)
    wb = jnp.where(valid[None, :, :, None, None], wb, 0.0)
    wb = (jnp.transpose(wb, (0, 2, 3, 1, 4))                                   # (K, W, Cin, Wo, Cout)
          .reshape(K * W * Cin, Wo * Cout)
          .astype(jnp.bfloat16))

    bias_row = jnp.tile(bias, Wo).reshape(1, Wo * Cout).astype(jnp.float32)    # [wo*Cout+co] = bias[co]
    return wb, bias_row


def conv_block_forward(x_nchw, wb, bias_row, *, Cout, K, padding=1, with_nonlinearity=True):
    """Forward pass matching PyTorch ConvBlock (stride=1, inference-mode BN), bf16 output."""
    B, Cin, H, W = x_nchw.shape
    Ho = H + 2 * padding - K + 1   # stride = 1
    Wo = W + 2 * padding - K + 1
    WC = W * Cin
    assert wb.shape == (K * WC, Wo * Cout)

    # Packed activation layout.  Keep activations in this layout between ConvBlocks; the
    # NCHW transposes below belong at graph boundaries only.
    x2d = (jnp.transpose(x_nchw, (0, 2, 3, 1))
           .reshape(B, H, WC)
           .astype(jnp.bfloat16))

    kernel = functools.partial(_conv_bn_relu_kernel, B=B, H=H, Ho=Ho, WC=WC,
                               pad=padding, K=K, with_relu=with_nonlinearity)

    flops = 2 * (B * Ho) * (K * WC) * (Wo * Cout)
    bytes_accessed = (x2d.size * 2 + wb.size * 2 + bias_row.size * 4
                      + (B * Ho) * (Wo * Cout) * 2)

    out2d = pl.pallas_call(
        kernel,
        out_shape=jax.ShapeDtypeStruct((B * Ho, Wo * Cout), jnp.bfloat16),
        grid=(1,),
        in_specs=[
            pl.BlockSpec((B, H, WC), lambda i: (0, 0, 0)),
            pl.BlockSpec((K * WC, Wo * Cout), lambda i: (0, 0)),
            pl.BlockSpec((1, Wo * Cout), lambda i: (0, 0)),
        ],
        out_specs=pl.BlockSpec((B * Ho, Wo * Cout), lambda i: (0, 0)),
        scratch_shapes=[pltpu.VMEM((B * Ho, K * WC), jnp.float32)],
        cost_estimate=pl.CostEstimate(flops=flops, transcendentals=0,
                                      bytes_accessed=bytes_accessed),
    )(x2d, wb, bias_row)

    # (B*Ho, Wo*Cout) -> NCHW to match the PyTorch module's interface (bf16).
    out = out2d.reshape(B, Ho, Wo, Cout)
    return jnp.transpose(out, (0, 3, 1, 2))


def _reference(x, w, conv_bias, gamma, beta, mean, var, *, eps=1e-5, padding=1, relu=True):
    y = lax.conv_general_dilated(
        x, w, window_strides=(1, 1), padding=((padding, padding), (padding, padding)),
        dimension_numbers=("NCHW", "OIHW", "NCHW"))
    y = y + conv_bias.reshape(1, -1, 1, 1)
    y = gamma.reshape(1, -1, 1, 1) * (y - mean.reshape(1, -1, 1, 1)) \
        / jnp.sqrt(var.reshape(1, -1, 1, 1) + eps) + beta.reshape(1, -1, 1, 1)
    if relu:
        y = jnp.maximum(y, 0.0)
    return y


if __name__ == "__main__":
    key = jax.random.PRNGKey(0)
    kx, kw, kb, kg, kbeta, km, kv = jax.random.split(key, 7)

    B, Cin, Cout, H, W, K = 2, 4, 8, 16, 16, 3

    x = jax.random.normal(kx, (B, Cin, H, W), jnp.float32)
    w = jax.random.normal(kw, (Cout, Cin, K, K), jnp.float32) * 0.1
    conv_bias = jax.random.normal(kb, (Cout,), jnp.float32) * 0.1
    gamma = 1.0 + 0.1 * jax.random.normal(kg, (Cout,), jnp.float32)
    beta = 0.1 * jax.random.normal(kbeta, (Cout,), jnp.float32)
    running_mean = 0.1 * jax.random.normal(km, (Cout,), jnp.float32)
    running_var = jnp.abs(1.0 + 0.1 * jax.random.normal(kv, (Cout,), jnp.float32))

    # Reference with bf16-rounded activations so only weight rounding / accumulation
    # order / output rounding differ from the kernel path.
    x_q = x.astype(jnp.bfloat16).astype(jnp.float32)

    # --- case 1: padding=1 + ReLU (the model34 ConvBlock configuration) ----------------
    wb, bias_row = prepare_conv_block_params(
        w, conv_bias, gamma, beta, running_mean, running_var, W=W, padding=1)
    fwd = jax.jit(functools.partial(conv_block_forward, Cout=Cout, K=K,
                                    padding=1, with_nonlinearity=True))
    out = jax.block_until_ready(fwd(x, wb, bias_row))
    ref = _reference(x_q, w, conv_bias, gamma, beta, running_mean, running_var,
                     padding=1, relu=True)
    assert out.shape == (B, Cout, H, W), out.shape
    err = float(jnp.max(jnp.abs(out.astype(jnp.float32) - ref)))
    assert jnp.allclose(out.astype(jnp.float32), ref, atol=2e-2, rtol=2e-2), err

    # --- case 2: padding=0 (Wo != W), no ReLU — exercises the band edges ----------------
    wb0, bias_row0 = prepare_conv_block_params(
        w, conv_bias, gamma, beta, running_mean, running_var, W=W, padding=0)
    fwd0 = jax.jit(functools.partial(conv_block_forward, Cout=Cout, K=K,
                                     padding=0, with_nonlinearity=False))
    out0 = jax.block_until_ready(fwd0(x, wb0, bias_row0))
    ref0 = _reference(x_q, w, conv_bias, gamma, beta, running_mean, running_var,
                      padding=0, relu=False)
    assert out0.shape == (B, Cout, H - 2, W - 2), out0.shape
    err0 = float(jnp.max(jnp.abs(out0.astype(jnp.float32) - ref0)))
    assert jnp.allclose(out0.astype(jnp.float32), ref0, atol=2e-2, rtol=2e-2), err0

    print("KERNEL_OK")
</pallas_src>

<mosaic_0001>
module attributes {stable_mosaic.version = 11 : i64} {
  func.func @_conv_bn_relu_kernel(%arg0: i32, %arg1: memref<2x16x64xbf16, #tpu.memory_space<vmem>>, %arg2: memref<192x128xbf16, #tpu.memory_space<vmem>>, %arg3: memref<1x128xf32, #tpu.memory_space<vmem>>, %arg4: memref<32x128xbf16, #tpu.memory_space<vmem>>, %arg5: memref<32x192xf32, #tpu.memory_space<vmem>>) attributes {dimension_semantics = [#tpu.dimension_semantics<arbitrary>], iteration_bounds = array<i64: 1>, scalar_prefetch = 0 : i64, scratch_operands = 1 : i64, tpu.core_type = #tpu.core_type<tc>, window_params = [{pipeline_mode = #tpu.pipeline_mode<synchronous>, transform_indices = @transform_0, window_bounds = array<i64: 2, 16, 64>}, {pipeline_mode = #tpu.pipeline_mode<synchronous>, transform_indices = @transform_1, window_bounds = array<i64: 192, 128>}, {pipeline_mode = #tpu.pipeline_mode<synchronous>, transform_indices = @transform_2, window_bounds = array<i64: 1, 128>}, {pipeline_mode = #tpu.pipeline_mode<synchronous>, transform_indices = @transform_3, window_bounds = array<i64: 32, 128>}]} {
    %c0 = arith.constant 0 : index
    %c0_0 = arith.constant 0 : index
    %c0_1 = arith.constant 0 : index
    %0 = vector.load %arg1[%c0, %c0_0, %c0_1] : memref<2x16x64xbf16, #tpu.memory_space<vmem>>, vector<1x16x64xbf16>
    %1 = vector.shape_cast %0 : vector<1x16x64xbf16> to vector<16x64xbf16>
    %2 = arith.extf %1 : vector<16x64xbf16> to vector<16x64xf32>
    %cst = arith.constant 0.000000e+00 : f32
    %3 = vector.broadcast %cst : f32 to vector<1x64xf32>
    %c0_2 = arith.constant 0 : index
    %c0_3 = arith.constant 0 : index
    %4 = vector.load %arg5[%c0_2, %c0_3] : memref<32x192xf32, #tpu.memory_space<vmem>>, vector<1x64xf32>
    tpu.vector_store %arg5[%c0_2, %c0_3], %3 {strides = array<i32>} : memref<32x192xf32, #tpu.memory_space<vmem>>, vector<1x64xf32>,
    %5 = vector.extract_strided_slice %2 {offsets = [0, 0], sizes = [15, 64], strides = [1, 1]} : vector<16x64xf32> to vector<15x64xf32>
    %c1 = arith.constant 1 : index
    %c0_4 = arith.constant 0 : index
    %6 = vector.load %arg5[%c1, %c0_4] : memref<32x192xf32, #tpu.memory_space<vmem>>, vector<15x64xf32>
    tpu.vector_store %arg5[%c1, %c0_4], %5 {strides = array<i32>} : memref<32x192xf32, #tpu.memory_space<vmem>>, vector<15x64xf32>,
    %c0_5 = arith.constant 0 : index
    %c64 = arith.constant 64 : index
    %7 = vector.load %arg5[%c0_5, %c64] : memref<32x192xf32, #tpu.memory_space<vmem>>, vector<16x64xf32>
    tpu.vector_store %arg5[%c0_5, %c64], %2 {strides = array<i32>} : memref<32x192xf32, #tpu.memory_space<vmem>>, vector<16x64xf32>,
    %cst_6 = arith.constant 0.000000e+00 : f32
    %8 = vector.broadcast %cst_6 : f32 to vector<1x64xf32>
    %c15 = arith.constant 15 : index
    %c128 = arith.constant 128 : index
    %9 = vector.load %arg5[%c15, %c128] : memref<32x192xf32, #tpu.memory_space<vmem>>, vector<1x64xf32>
    tpu.vector_store %arg5[%c15, %c128], %8 {strides = array<i32>} : memref<32x192xf32, #tpu.memory_space<vmem>>, vector<1x64xf32>,
    %10 = vector.extract_strided_slice %2 {offsets = [1, 0], sizes = [15, 64], strides = [1, 1]} : vector<16x64xf32> to vector<15x64xf32>
    %c0_7 = arith.constant 0 : index
    %c128_8 = arith.constant 128 : index
    %11 = vector.load %arg5[%c0_7, %c128_8] : memref<32x192xf32, #tpu.memory_space<vmem>>, vector<15x64xf32>
    tpu.vector_store %arg5[%c0_7, %c128_8], %10 {strides = array<i32>} : memref<32x192xf32, #tpu.memory_space<vmem>>, vector<15x64xf32>,
    %c1_9 = arith.constant 1 : index
    %c0_10 = arith.constant 0 : index
    %c0_11 = arith.constant 0 : index
    %12 = vector.load %arg1[%c1_9, %c0_10, %c0_11] : memref<2x16x64xbf16, #tpu.memory_space<vmem>>, vector<1x16x64xbf16>
    %13 = vector.shape_cast %12 : vector<1x16x64xbf16> to vector<16x64xbf16>
    %14 = arith.extf %13 : vector<16x64xbf16> to vector<16x64xf32>
    %cst_12 = arith.constant 0.000000e+00 : f32
    %15 = vector.broadcast %cst_12 : f32 to vector<1x64xf32>
    %c16 = arith.constant 16 : index
    %c0_13 = arith.constant 0 : index
    %16 = vector.load %arg5[%c16, %c0_13] : memref<32x192xf32, #tpu.memory_space<vmem>>, vector<1x64xf32>
    tpu.vector_store %arg5[%c16, %c0_13], %15 {strides = array<i32>} : memref<32x192xf32, #tpu.memory_space<vmem>>, vector<1x64xf32>,
    %17 = vector.extract_strided_slice %14 {offsets = [0, 0], sizes = [15, 64], strides = [1, 1]} : vector<16x64xf32> to vector<15x64xf32>
    %c17 = arith.constant 17 : index
    %c0_14 = arith.constant 0 : index
    %18 = vector.load %arg5[%c17, %c0_14] : memref<32x192xf32, #tpu.memory_space<vmem>>, vector<15x64xf32>
    tpu.vector_store %arg5[%c17, %c0_14], %17 {strides = array<i32>} : memref<32x192xf32, #tpu.memory_space<vmem>>, vector<15x64xf32>,
    %c16_15 = arith.constant 16 : index
    %c64_16 = arith.constant 64 : index
    %19 = vector.load %arg5[%c16_15, %c64_16] : memref<32x192xf32, #tpu.memory_space<vmem>>, vector<16x64xf32>
    tpu.vector_store %arg5[%c16_15, %c64_16], %14 {strides = array<i32>} : memref<32x192xf32, #tpu.memory_space<vmem>>, vector<16x64xf32>,
    %cst_17 = arith.constant 0.000000e+00 : f32
    %20 = vector.broadcast %cst_17 : f32 to vector<1x64xf32>
    %c31 = arith.constant 31 : index
    %c128_18 = arith.constant 128 : index
    %21 = vector.load %arg5[%c31, %c128_18] : memref<32x192xf32, #tpu.memory_space<vmem>>, vector<1x64xf32>
    tpu.vector_store %arg5[%c31, %c128_18], %20 {strides = array<i32>} : memref<32x192xf32, #tpu.memory_space<vmem>>, vector<1x64xf32>,
    %22 = vector.extract_strided_slice %14 {offsets = [1, 0], sizes = [15, 64], strides = [1, 1]} : vector<16x64xf32> to vector<15x64xf32>
    %c16_19 = arith.constant 16 : index
    %c128_20 = arith.constant 128 : index
    %23 = vector.load %arg5[%c16_19, %c128_20] : memref<32x192xf32, #tpu.memory_space<vmem>>, vector<15x64xf32>
    tpu.vector_store %arg5[%c16_19, %c128_20], %22 {strides = array<i32>} : memref<32x192xf32, #tpu.memory_space<vmem>>, vector<15x64xf32>,
    %c0_21 = arith.constant 0 : index
    %c0_22 = arith.constant 0 : index
    %24 = vector.load %arg5[%c0_21, %c0_22] : memref<32x192xf32, #tpu.memory_space<vmem>>, vector<32x192xf32>
    %25 = arith.truncf %24 : vector<32x192xf32> to vector<32x192xbf16>
    %c0_23 = arith.constant 0 : index
    %c0_24 = arith.constant 0 : index
    %26 = vector.load %arg2[%c0_23, %c0_24] : memref<192x128xbf16, #tpu.memory_space<vmem>>, vector<192x128xbf16>
    %cst_25 = arith.constant dense<0.000000e+00> : vector<32x128xf32>
    %27 = tpu.matmul %25, %26, %cst_25 {dimension_numbers = #tpu.dot_dimension_numbers<[1], [0], [0], [1], [0, 0, 1, 1], [], []>} : vector<32x192xbf16>, vector<192x128xbf16>, vector<32x128xf32> -> vector<32x128xf32>
    %c0_26 = arith.constant 0 : index
    %c0_27 = arith.constant 0 : index
    %28 = vector.load %arg3[%c0_26, %c0_27] : memref<1x128xf32, #tpu.memory_space<vmem>>, vector<1x128xf32>
    %29 = vector.broadcast %28 : vector<1x128xf32> to vector<32x128xf32>
    %30 = arith.addf %27, %29 : vector<32x128xf32>
    %cst_28 = arith.constant 0.000000e+00 : f32
    %31 = vector.broadcast %cst_28 : f32 to vector<32x128xf32>
    %32 = arith.maximumf %30, %31 : vector<32x128xf32>
    %33 = arith.truncf %32 : vector<32x128xf32> to vector<32x128xbf16>
    %c0_29 = arith.constant 0 : index
    %c0_30 = arith.constant 0 : index
    %34 = vector.load %arg4[%c0_29, %c0_30] : memref<32x128xbf16, #tpu.memory_space<vmem>>, vector<32x128xbf16>
    tpu.vector_store %arg4[%c0_29, %c0_30], %33 {strides = array<i32>} : memref<32x128xbf16, #tpu.memory_space<vmem>>, vector<32x128xbf16>,
    return
  }
  func.func @transform_0(%arg0: i32) -> (i32, i32, i32) {
    %c0_i32 = arith.constant 0 : i32
    %c0_i32_0 = arith.constant 0 : i32
    %c0_i32_1 = arith.constant 0 : i32
    %c0_i32_2 = arith.constant 0 : i32
    return %c0_i32, %c0_i32_0, %c0_i32_1 : i32, i32, i32
  }
  func.func @transform_1(%arg0: i32) -> (i32, i32) {
    %c0_i32 = arith.constant 0 : i32
    %c0_i32_0 = arith.constant 0 : i32
    %c0_i32_1 = arith.constant 0 : i32
    return %c0_i32, %c0_i32_0 : i32, i32
  }
  func.func @transform_2(%arg0: i32) -> (i32, i32) {
    %c0_i32 = arith.constant 0 : i32
    %c0_i32_0 = arith.constant 0 : i32
    %c0_i32_1 = arith.constant 0 : i32
    return %c0_i32, %c0_i32_0 : i32, i32
  }
  func.func @transform_3(%arg0: i32) -> (i32, i32) {
    %c0_i32 = arith.constant 0 : i32
    %c0_i32_0 = arith.constant 0 : i32
    %c0_i32_1 = arith.constant 0 : i32
    return %c0_i32, %c0_i32_0 : i32, i32
  }
}

</mosaic_0001>

<llo_original>
// kernel: conv_block_forward.1
$region0: #{conv_block_forward.1}
  #allocation0 [shape = 'u32[]', space=smem, size = 0x4, offset = 0x4, fixed_abs, tag = 'smem constant byte address 0x4 - core index']
  #allocation1 [shape = 'u32[72,128]{1,0:T(1,128)}', space=vmem, size = 0x9000, scoped, tag = 'internal scratch']
  #allocation2 [shape = 'f32[32,192]{1,0:T(8,128)}', space=vmem, size = 0x8000, scoped, tag = 'scratch operand']
  %s0 = inlined_call_operand.vmem [shape: bf16[2,16,64], index: 0, kind: input, shape index: {}]
  %s1 = inlined_call_operand.vmem [shape: bf16[192,128], index: 1, kind: input, shape index: {}]
  %s2 = inlined_call_operand.vmem [shape: f32[1,128], index: 2, kind: input, shape index: {}]
  %s3 = inlined_call_operand.vmem [shape: bf16[32,128], index: 3, kind: output, shape index: {}]
  %s4 = sld [smem:[#allocation0]]
  $region22: #{conv_block_forward.1} parent=0
    _
  %s6 = ssub.s32 1, %s4
  %s7 = scalar_select 0, %s6, %s4
  // Predicated region
  $region2: #{conv_block_forward.1} parent=0 // pred_check
    _
  $region3: #{conv_block_forward.1} parent=0 // pred_check_branch
    %9 = sbr.rel (0) target = $region5
  $region4: #{conv_block_forward.1} parent=0 // pred_region
    _
  $region5: #{conv_block_forward.1} parent=0 // pred_fallthru
    _
  // Predicated region
  $region6: #{conv_block_forward.1} parent=0 // pred_check
    _
  $region7: #{conv_block_forward.1} parent=0 // pred_check_branch
    %11 = sbr.rel (0) target = $region9
  $region8: #{conv_block_forward.1} parent=0 // pred_region
    _
  $region9: #{conv_block_forward.1} parent=0 // pred_fallthru
    _
  // Predicated region
  $region10: #{conv_block_forward.1} parent=0 // pred_check
    _
  $region11: #{conv_block_forward.1} parent=0 // pred_check_branch
    %13 = sbr.rel (0) target = $region13
  $region12: #{conv_block_forward.1} parent=0 // pred_region
    _
  $region13: #{conv_block_forward.1} parent=0 // pred_fallthru
    _
  %v15 = vld [vmem:[%s0] sm:$0xf]
  %v16 = vld [vmem:[%s0 + $0x4] sm:$0xf]
  %v17 = vunpack.c.l.bf16 %v15
  %v18 = vunpack.c.l.bf16 %v16
  %vm19 = vcmask 516096
  %20 = vst.msk [vmem:[#allocation2] sm:$0x1] %vm19, 0.0
  %vm23 = vcmask 1040384
  %v24 = vrot.slane %v17, 7
  %v25 = vrot.slane %v18, 7
  %v26 = vsel %vm23, %v24, %v25
  %vm29 = vcmask 523265
  %30 = vst.msk [vmem:[#allocation2] sm:$0xfe] %vm29, %v24
  %vm31 = vcmask 523264
  %32 = vst.msk [vmem:[#allocation2 + $0x10] sm:$0xff] %vm31, %v26
  %33 = vrot.lane.b32.xlu0 %v17, 64
  %v34 = vpop.permute.xlu0 %33
  %35 = vrot.lane.b32.xlu0 %v18, 64
  %v36 = vpop.permute.xlu0 %35
  %vm39 = vcmask 1048064
  %40 = vst.msk [vmem:[#allocation2] sm:$0xff] %vm39, %v34
  %41 = vst.msk [vmem:[#allocation2 + $0x10] sm:$0xff] %vm39, %v36
  %42 = vst.msk [vmem:[#allocation2 + $0x1f] sm:$0x1] %vm19, 0.0
  %vm43 = vcmask 1046528
  %v44 = vrot.slane %v17, 1
  %v45 = vrot.slane %v18, 1
  %v46 = vsel %vm43, %v44, %v45
  %49 = vst.msk [vmem:[#allocation2 + $0x8] sm:$0xff] %vm31, %v46
  %vm50 = vcmask 522240
  %51 = vst.msk [vmem:[#allocation2 + $0x18] sm:$0x7f] %vm50, %v45
  %s52 = scalar_lea.vmem %s0, 8
  %v53 = vld [vmem:[%s52] sm:$0xf]
  %v54 = vld [vmem:[%s52 + $0x4] sm:$0xf]
  %v55 = vunpack.c.l.bf16 %v53
  %v56 = vunpack.c.l.bf16 %v54
  %57 = vst.msk [vmem:[#allocation2 + $0x20] sm:$0x1] %vm19, 0.0
  %v60 = vrot.slane %v55, 7
  %v61 = vrot.slane %v56, 7
  %v62 = vsel %vm23, %v60, %v61
  %65 = vst.msk [vmem:[#allocation2 + $0x20] sm:$0xfe] %vm29, %v60
  %66 = vst.msk [vmem:[#allocation2 + $0x30] sm:$0xff] %vm31, %v62
  %67 = vrot.lane.b32.xlu0 %v55, 64
  %v68 = vpop.permute.xlu0 %67
  %69 = vrot.lane.b32.xlu0 %v56, 64
  %v70 = vpop.permute.xlu0 %69
  %73 = vst.msk [vmem:[#allocation2 + $0x20] sm:$0xff] %vm39, %v68
  %74 = vst.msk [vmem:[#allocation2 + $0x30] sm:$0xff] %vm39, %v70
  %75 = vst.msk [vmem:[#allocation2 + $0x3f] sm:$0x1] %vm19, 0.0
  %v76 = vrot.slane %v55, 1
  %v77 = vrot.slane %v56, 1
  %v78 = vsel %vm43, %v76, %v77
  %81 = vst.msk [vmem:[#allocation2 + $0x28] sm:$0xff] %vm31, %v78
  %82 = vst.msk [vmem:[#allocation2 + $0x38] sm:$0x7f] %vm50, %v77
  %v83 = vld [vmem:[#allocation2] sm:$0xff]
  %v84 = vld [vmem:[#allocation2 + $0x8] sm:$0xff]
  %v85 = vld [vmem:[#allocation2 + $0x10] sm:$0xff]
  %v86 = vld [vmem:[#allocation2 + $0x18] sm:$0xff]
  %v87 = vld [vmem:[#allocation2 + $0x20] sm:$0xff]
  %v88 = vld [vmem:[#allocation2 + $0x28] sm:$0xff]
  %v89 = vld [vmem:[#allocation2 + $0x30] sm:$0xff]
  %v90 = vld [vmem:[#allocation2 + $0x38] sm:$0xff]
  %v91 = vpack.c.bf16 %v85, %v83
  %v92 = vpack.c.bf16 %v86, %v84
  %v93 = vpack.c.bf16 %v89, %v87
  %v94 = vpack.c.bf16 %v90, %v88
  %v95 = vld [vmem:[%s1] sm:$0xf]
  %v96 = vld [vmem:[%s1 + $0x4] sm:$0xf]
  %v97 = vld [vmem:[%s1 + $0x8] sm:$0xf]
  %v98 = vld [vmem:[%s1 + $0xc] sm:$0xf]
  %v99 = vld [vmem:[%s1 + $0x10] sm:$0xf]
  %v100 = vld [vmem:[%s1 + $0x14] sm:$0xf]
  %v101 = vld [vmem:[%s1 + $0x18] sm:$0xf]
  %v102 = vld [vmem:[%s1 + $0x1c] sm:$0xf]
  %v103 = vld [vmem:[%s1 + $0x20] sm:$0xf]
  %v104 = vld [vmem:[%s1 + $0x24] sm:$0xf]
  %v105 = vld [vmem:[%s1 + $0x28] sm:$0xf]
  %v106 = vld [vmem:[%s1 + $0x2c] sm:$0xf]
  %v107 = vld [vmem:[%s1 + $0x30] sm:$0xf]
  %v108 = vld [vmem:[%s1 + $0x34] sm:$0xf]
  %v109 = vld [vmem:[%s1 + $0x38] sm:$0xf]
  %v110 = vld [vmem:[%s1 + $0x3c] sm:$0xf]
  %v111 = vld [vmem:[%s1 + $0x40] sm:$0xf]
  %v112 = vld [vmem:[%s1 + $0x44] sm:$0xf]
  %v113 = vld [vmem:[%s1 + $0x48] sm:$0xf]
  %v114 = vld [vmem:[%s1 + $0x4c] sm:$0xf]
  %v115 = vld [vmem:[%s1 + $0x50] sm:$0xf]
  %v116 = vld [vmem:[%s1 + $0x54] sm:$0xf]
  %v117 = vld [vmem:[%s1 + $0x58] sm:$0xf]
  %v118 = vld [vmem:[%s1 + $0x5c] sm:$0xf]
  %v119 = vld [vmem:[%s2] sm:$0x1]
  %v121 = vperm.slane %v119, 0
  %v147 = vunpack.c.l.b16 %v95
  %v148 = vunpack.c.l.b16 %v96
  %v149 = vunpack.c.l.b16 %v97
  %v150 = vunpack.c.l.b16 %v98
  %v151 = vunpack.c.l.b16 %v99
  %v152 = vunpack.c.l.b16 %v100
  %v153 = vunpack.c.l.b16 %v101
  %v154 = vunpack.c.l.b16 %v102
  %v155 = vunpack.c.l.b16 %v103
  %v156 = vunpack.c.l.b16 %v104
  %v157 = vunpack.c.l.b16 %v105
  %v158 = vunpack.c.l.b16 %v106
  %v159 = vunpack.c.l.b16 %v107
  %v160 = vunpack.c.l.b16 %v108
  %v161 = vunpack.c.l.b16 %v109
  %v162 = vunpack.c.l.b16 %v110
  %v163 = vunpack.c.l.b16 %v111
  %v164 = vunpack.c.l.b16 %v112
  %v165 = vunpack.c.l.b16 %v113
  %v166 = vunpack.c.l.b16 %v114
  %v167 = vunpack.c.l.b16 %v115
  %v168 = vunpack.c.l.b16 %v116
  %v169 = vunpack.c.l.b16 %v117
  %v170 = vunpack.c.l.b16 %v118
  %v171 = vpack.c.b16 %v148, %v147
  %v172 = vpack.c.b16 %v150, %v149
  %v173 = vpack.c.b16 %v152, %v151
  %v174 = vpack.c.b16 %v154, %v153
  %v175 = vpack.c.b16 %v156, %v155
  %v176 = vpack.c.b16 %v158, %v157
  %v177 = vpack.c.b16 %v160, %v159
  %v178 = vpack.c.b16 %v162, %v161
  %v179 = vpack.c.b16 %v164, %v163
  %v180 = vpack.c.b16 %v166, %v165
  %v181 = vpack.c.b16 %v168, %v167
  %v182 = vpack.c.b16 %v170, %v169
  %v196 = vsel %vm31, %v92, 0
  %v199 = vsel %vm31, %v94, 0
  %201 = vmatpush.bf16.msra.mxu0 %v178
  %202 = vmatpush.bf16.msra.mxu0 %v177
  %203 = vmatpush.bf16.msra.mxu0 %v176
  %204 = vmatpush.bf16.msra.mxu0 %v175
  %205 = vmatpush.bf16.msra.mxu0 %v174
  %206 = vmatpush.bf16.msra.mxu0 %v173
  %207 = vmatpush.bf16.msra.mxu0 %v172
  %208 = vmatpush.bf16.msra.mxu0 %v171
  %209 = vmatmul.bf16.gmra.mxu0 %v91
  %v210 = vpop.f32.mrf.mxu0
  %v211 = vadd.f32 %v121, %v210
  %v212 = vpop.f32.mrf.mxu0
  %v213 = vadd.f32 %v121, %v212
  %214 = vmatmul.bf16.gmra.mxu0 %v93
  %v215 = vpop.f32.mrf.mxu0
  %v216 = vadd.f32 %v121, %v215
  %v217 = vpop.f32.mrf.mxu0
  %v218 = vadd.f32 %v121, %v217
  %219 = vdwg.mxu0
  %220 = vmatpush.bf16.msra.mxu0 0
  %221 = vmatpush.bf16.msra.mxu0 0
  %222 = vmatpush.bf16.msra.mxu0 0
  %223 = vmatpush.bf16.msra.mxu0 0
  %224 = vmatpush.bf16.msra.mxu0 %v182
  %225 = vmatpush.bf16.msra.mxu0 %v181
  %226 = vmatpush.bf16.msra.mxu0 %v180
  %227 = vmatpush.bf16.msra.mxu0 %v179
  %228 = vmatmul.bf16.gmra.mxu0 %v196
  %v229 = vpop.f32.mrf.mxu0
  %v230 = vadd.f32 %v211, %v229
  %v231 = vpop.f32.mrf.mxu0
  %v232 = vadd.f32 %v213, %v231
  %233 = vmatmul.bf16.gmra.mxu0 %v199
  %v234 = vpop.f32.mrf.mxu0
  %v235 = vadd.f32 %v216, %v234
  %v236 = vpop.f32.mrf.mxu0
  %v237 = vadd.f32 %v218, %v236
  %238 = vdwg.mxu0
  %v239 = vmax.f32 %v230, 0.0
  %v240 = vmax.f32 %v232, 0.0
  %v241 = vmax.f32 %v235, 0.0
  %v242 = vmax.f32 %v237, 0.0
  %v243 = vpack.c.bf16 %v239, %v239
  %v244 = vpack.c.bf16 %v240, %v240
  %v245 = vpack.c.bf16 %v241, %v241
  %v246 = vpack.c.bf16 %v242, %v242
  %247 = vst [vmem:[%s3] sm:$0xf] %v243
  %248 = vst [vmem:[%s3 + $0x4] sm:$0xf] %v244
  %249 = vst [vmem:[%s3 + $0x8] sm:$0xf] %v245
  %250 = vst [vmem:[%s3 + $0xc] sm:$0xf] %v246
  // Predicated region
  $region14: #{conv_block_forward.1} parent=0 // pred_check
    _
  $region15: #{conv_block_forward.1} parent=0 // pred_check_branch
    %252 = sbr.rel (0) target = $region17
  $region16: #{conv_block_forward.1} parent=0 // pred_region
    _
  $region17: #{conv_block_forward.1} parent=0 // pred_fallthru
    _
  // Predicated region
  $region18: #{conv_block_forward.1} parent=0 // pred_check
    _
  $region19: #{conv_block_forward.1} parent=0 // pred_check_branch
    %254 = sbr.rel (0) target = $region21
  $region20: #{conv_block_forward.1} parent=0 // pred_region
    _
  $region21: #{conv_block_forward.1} parent=0 // pred_fallthru
    _

</llo_original>
